<compile_context>
chip_gen: v7x
topology: tpu7x:2x2x1
jax: 0.10.0
libtpu: 0.0.40
codegen_flags: <defaults>
</compile_context>

<pallas_src>
import functools
import math

import jax
import jax.numpy as jnp
from jax.experimental import pallas as pl
from jax.experimental.pallas import tpu as pltpu

_EPS = 1e-5                     # nn.LayerNorm default eps
_INV_SQRT2 = 0.7071067811865476
_LANE = 128


def _round_up(x, m):
    return ((x + m - 1) // m) * m


def _erf(x):
    # Abramowitz & Stegun 7.1.26 (|err| <= 1.5e-7): exact-GELU quality at f32,
    # built only from ops with guaranteed Mosaic lowerings (exp, mul, add, div).
    a1, a2, a3, a4, a5 = 0.254829592, -0.284496736, 1.421413741, -1.453152027, 1.061405429
    p = 0.3275911
    sgn = jnp.where(x < 0.0, -1.0, 1.0)
    ax = jnp.abs(x)
    t = 1.0 / (1.0 + p * ax)
    poly = ((((a5 * t + a4) * t + a3) * t + a2) * t + a1) * t
    return sgn * (1.0 - poly * jnp.exp(-ax * ax))


def _build_scatter(idx_ref, offsets, sizes, total_rows_p, bt, dtype):
    """Build the (bt, total_rows_p) 0/1 one-hot scatter matrix.

    scatter[b, offsets[f] + idx[b, f]] = 1 for every feature f.  Feature column
    ranges are disjoint so values stay exactly 0/1 (bf16-safe).  For vocabularies
    spanning multiple 128-lane tiles, each feature's compare is restricted to
    the tiles covering its range (≈n_cat_feat-fold less VPU compare work).
    """
    n_cat_feat = len(offsets)
    if total_rows_p % _LANE == 0 and total_rows_p // _LANE >= 2:
        slabs = []
        for t in range(total_rows_p // _LANE):
            lo, hi = t * _LANE, (t + 1) * _LANE
            cols = jax.lax.broadcasted_iota(jnp.int32, (1, _LANE), 1) + lo
            slab = None
            for f in range(n_cat_feat):
                if offsets[f] + sizes[f] <= lo or offsets[f] >= hi:
                    continue
                tgt = idx_ref[:, f:f + 1] + offsets[f]            # (bt, 1)
                hit = (cols == tgt).astype(dtype)                 # (bt, LANE)
                slab = hit if slab is None else slab + hit
            if slab is None:
                slab = jnp.zeros((bt, _LANE), dtype)
            slabs.append(slab)
        return jnp.concatenate(slabs, axis=-1)
    # Small vocabulary: single full-width slab, no (bt, total_rows) iota.
    cols = jax.lax.broadcasted_iota(jnp.int32, (1, total_rows_p), 1)
    scatter = None
    for f in range(n_cat_feat):
        tgt = idx_ref[:, f:f + 1] + offsets[f]                    # (bt, 1)
        hit = (cols == tgt).astype(dtype)                         # (bt, total_rows_p)
        scatter = hit if scatter is None else scatter + hit
    return scatter


def _catpool_kernel(offsets, sizes,
                    idx_ref,      # (bt, n_cat_feat) int32
                    wc_ref,       # (total_rows_p, n_output)  (w-scaled E) @ W^T
                    bp_ref,       # (1, n_output) f32   Linear bias
                    g_ref,        # (1, n_output) f32   LayerNorm gamma
                    b_ref,        # (1, n_output) f32   LayerNorm beta
                    out_ref):     # (bt, n_output)
    bt = idx_ref.shape[0]
    total_rows_p = wc_ref.shape[0]

    scatter = _build_scatter(idx_ref, offsets, sizes, total_rows_p, bt, wc_ref.dtype)

    # ---- single fused MXU pass: embedding pooling + Linear in one matmul ----
    h = jnp.dot(scatter, wc_ref[...],
                preferred_element_type=jnp.float32) + bp_ref[...]

    # ---- LayerNorm (single reduction pass: var = E[h^2] - mu^2) ----
    mu = jnp.mean(h, axis=-1, keepdims=True)
    ex2 = jnp.mean(h * h, axis=-1, keepdims=True)
    var = jnp.maximum(ex2 - mu * mu, 0.0)
    hn = (h - mu) * jax.lax.rsqrt(var + _EPS) * g_ref[...] + b_ref[...]

    # ---- exact-erf GELU (Dropout = identity at eval) ----
    out_ref[...] = (0.5 * hn * (1.0 + _erf(hn * _INV_SQRT2))).astype(out_ref.dtype)


def _pick_bt(batch):
    """Batch tile (sublane-aligned): prefer >=2 grid steps (v7x has 2 TCs),
    then minimal tail padding, then the largest tile.  Capped at 256 rows so
    the per-step working set fits v7x's 64 MiB (32 MiB scoped) VMEM."""
    if batch <= 8:
        return 8
    best_bt, best_key = 8, None
    for cand in (256, 224, 192, 160, 128, 96, 64, 48, 32, 24, 16, 8):
        b_pad = _round_up(batch, cand)
        steps = b_pad // cand
        key = (0 if steps >= 2 else 1, b_pad - batch, -cand)
        if best_key is None or key < best_key:
            best_bt, best_key = cand, key
    return best_bt


def _const_spec(shape):
    """BlockSpec for operands whose block index never changes across the grid:
    single-buffer them (halves their VMEM footprint).  Falls back gracefully if
    the pipeline_mode kwarg is unavailable."""
    index_map = lambda i: (0,) * len(shape)
    try:
        return pl.BlockSpec(shape, index_map, pipeline_mode=pl.Buffered(1))
    except (TypeError, ValueError, AttributeError):
        return pl.BlockSpec(shape, index_map)


def batch_encoder_catpool_forward(batch_factors, params, n_cat_list,
                                  use_bf16_matmul=False):
    """Returns (projected_batch_embed (B, n_output), weight (n_cat_feat,))."""
    B, n_cat_feat = batch_factors.shape
    assert n_cat_feat == len(n_cat_list)
    n_output = params["wp"].shape[0]

    # softmax of the pooling weights (tiny vector; also a module output)
    weight = jax.nn.softmax(params["w_logits"].astype(jnp.float32))

    offsets, sizes, acc = [], [], 0
    for n in n_cat_list:
        offsets.append(acc)
        sizes.append(n)
        acc += n
    offsets, sizes = tuple(offsets), tuple(sizes)
    total_rows = acc
    total_rows_p = _round_up(total_rows, 8)

    # ---- prefuse: W_comb = (softmax(w)-scaled stacked E) @ W^T ----
    emb_stack = jnp.concatenate([t.astype(jnp.float32) for t in params["emb"]], axis=0)
    w_rows = jnp.concatenate(
        [jnp.full((n,), weight[i], jnp.float32) for i, n in enumerate(n_cat_list)])
    w_comb = jnp.dot(w_rows[:, None] * emb_stack,
                     params["wp"].T.astype(jnp.float32),
                     precision=jax.lax.Precision.HIGHEST)        # (total_rows, n_output)
    if total_rows_p != total_rows:
        w_comb = jnp.pad(w_comb, ((0, total_rows_p - total_rows), (0, 0)))
    if use_bf16_matmul:
        # Native MXU rate on all generations, half the resident VMEM
        # (~1e-3 relative rounding; keep f32 accumulation in the kernel).
        w_comb = w_comb.astype(jnp.bfloat16)
    # TODO(synk): for total_rows beyond ~2-4k the one-hot matmul's FLOPs and the
    # (bt, total_rows) scatter VMEM scale linearly with the vocabulary; switch
    # to a gather-based pooled embedding (PrefetchScalarGridSpec / per-feature
    # DMA) in that regime.

    bp = params["bp"].astype(jnp.float32).reshape(1, -1)
    g = params["g"].astype(jnp.float32).reshape(1, -1)
    b = params["b"].astype(jnp.float32).reshape(1, -1)

    # ---- batch tiling: >=2 grid steps when possible, minimal tail padding ----
    bt = _pick_bt(B)
    b_pad = _round_up(B, bt)
    idx = batch_factors.astype(jnp.int32)
    if b_pad != B:
        idx = jnp.pad(idx, ((0, b_pad - B), (0, 0)))     # pad rows use index 0 (valid)

    # VMEM budget from the actual resident set (v5e scoped default is 16 MiB,
    # v7x physical is 64 MiB), with 2x headroom, clamped to [4 MiB, 64 MiB].
    itemsize = 2 if use_bf16_matmul else 4
    resident = (itemsize * total_rows_p * n_output          # W_comb (single-buffered)
                + 4 * 3 * n_output                          # bias / gamma / beta
                + 2 * 4 * bt * n_cat_feat                   # idx (double-buffered)
                + 2 * 4 * bt * n_output                     # out (double-buffered)
                + itemsize * bt * total_rows_p              # scatter intermediate
                + 4 * 4 * bt * n_output)                    # h / LN / GELU temporaries
    vmem_limit = int(min(64 * 1024 * 1024, max(4 * 1024 * 1024, 2 * resident)))

    cost = pl.CostEstimate(
        flops=int(2 * b_pad * total_rows_p * n_output + 12 * b_pad * n_output),
        transcendentals=int(b_pad * n_output + b_pad),
        bytes_accessed=int(4 * b_pad * n_cat_feat + 4 * b_pad * n_output
                           + itemsize * total_rows_p * n_output + 4 * 3 * n_output))

    kernel = functools.partial(_catpool_kernel, offsets, sizes)

    out = pl.pallas_call(
        kernel,
        out_shape=jax.ShapeDtypeStruct((b_pad, n_output), jnp.float32),
        grid=(b_pad // bt,),
        in_specs=[
            pl.BlockSpec((bt, n_cat_feat), lambda i: (i, 0)),    # idx (per-step)
            _const_spec((total_rows_p, n_output)),               # W_comb
            _const_spec((1, n_output)),                          # bias
            _const_spec((1, n_output)),                          # gamma
            _const_spec((1, n_output)),                          # beta
        ],
        out_specs=pl.BlockSpec((bt, n_output), lambda i: (i, 0)),
        compiler_params=pltpu.CompilerParams(
            dimension_semantics=("parallel",),
            vmem_limit_bytes=vmem_limit),
        cost_estimate=cost,
    )(idx, w_comb, bp, g, b)

    return out[:B], weight


def reference_forward(batch_factors, params, n_cat_list):
    """Pure-JAX reference matching the PyTorch eval forward."""
    w = jax.nn.softmax(params["w_logits"].astype(jnp.float32))
    B = batch_factors.shape[0]
    n_embed = params["emb"][0].shape[1]
    pooled = jnp.zeros((B, n_embed), jnp.float32)
    for fid in range(len(n_cat_list)):
        emb = params["emb"][fid][batch_factors[:, fid]]   # embedding gather
        pooled = pooled + w[fid] * emb
    h = jnp.dot(pooled, params["wp"].T,
                precision=jax.lax.Precision.HIGHEST) + params["bp"]
    mu = jnp.mean(h, axis=-1, keepdims=True)
    var = jnp.mean((h - mu) ** 2, axis=-1, keepdims=True)
    h = (h - mu) / jnp.sqrt(var + _EPS) * params["g"] + params["b"]
    h = jax.nn.gelu(h, approximate=False)                 # exact (erf) GELU
    return h, w


def init_params(key, n_cat_list, n_embed, n_output):
    n_cat_feat = len(n_cat_list)
    ks = jax.random.split(key, n_cat_feat + 3)
    emb = [jax.random.normal(ks[i], (n_cat_list[i], n_embed), jnp.float32)
           for i in range(n_cat_feat)]
    w_logits = jax.random.normal(ks[n_cat_feat], (n_cat_feat,), jnp.float32)
    lim = 1.0 / math.sqrt(n_embed)
    wp = jax.random.uniform(ks[n_cat_feat + 1], (n_output, n_embed),
                            jnp.float32, -lim, lim)
    bp = jax.random.uniform(ks[n_cat_feat + 2], (n_output,),
                            jnp.float32, -lim, lim)
    return {
        "emb": emb,
        "w_logits": w_logits,
        "wp": wp,
        "bp": bp,
        "g": jnp.ones((n_output,), jnp.float32),
        "b": jnp.zeros((n_output,), jnp.float32),
    }


if __name__ == "__main__":
    # Small shapes: batch=10, 3 categorical features with 4/5/6 categories,
    # n_embed=32, projection output n_output=128 (lane-dense).
    # NOTE: the original module's __init__ references self.n_output / self.p_drop
    # (set by a parent class in the source repo); here n_output is an explicit
    # hyperparameter and dropout is the eval-time identity.
    n_cat_list = (4, 5, 6)
    n_embed = 32
    n_output = 128
    B = 10

    key = jax.random.PRNGKey(0)
    kp, kx = jax.random.split(key)
    params = init_params(kp, n_cat_list, n_embed, n_output)

    kxs = jax.random.split(kx, len(n_cat_list))
    batch_factors = jnp.concatenate(
        [jax.random.randint(kxs[i], (B, 1), 0, n, dtype=jnp.int32)
         for i, n in enumerate(n_cat_list)], axis=1)      # (B, n_cat_feat)

    out, weight = batch_encoder_catpool_forward(batch_factors, params, n_cat_list)
    out = jax.block_until_ready(out)

    ref_out, ref_w = reference_forward(batch_factors, params, n_cat_list)
    assert out.shape == (B, n_output)
    assert weight.shape == (len(n_cat_list),)
    max_err = float(jnp.max(jnp.abs(out - ref_out)))
    assert jnp.allclose(out, ref_out, atol=1e-4, rtol=1e-4), f"max abs err {max_err}"
    assert jnp.allclose(weight, ref_w, atol=1e-6, rtol=1e-6)
    print("KERNEL_OK")
</pallas_src>

<mosaic_0001>
module attributes {stable_mosaic.version = 11 : i64} {
  func.func @_catpool_kernel(%arg0: i32, %arg1: memref<8x3xi32, #tpu.memory_space<vmem>>, %arg2: memref<16x128xf32, #tpu.memory_space<vmem>>, %arg3: memref<1x128xf32, #tpu.memory_space<vmem>>, %arg4: memref<1x128xf32, #tpu.memory_space<vmem>>, %arg5: memref<1x128xf32, #tpu.memory_space<vmem>>, %arg6: memref<8x128xf32, #tpu.memory_space<vmem>>) attributes {dimension_semantics = [#tpu.dimension_semantics<parallel>], iteration_bounds = array<i64: 2>, scalar_prefetch = 0 : i64, scratch_operands = 0 : i64, tpu.core_type = #tpu.core_type<tc>, window_params = [{transform_indices = @transform_0, window_bounds = array<i64: 8, 3>}, {pipeline_mode = #tpu.pipeline_mode<synchronous>, transform_indices = @transform_1, window_bounds = array<i64: 16, 128>}, {pipeline_mode = #tpu.pipeline_mode<synchronous>, transform_indices = @transform_2, window_bounds = array<i64: 1, 128>}, {pipeline_mode = #tpu.pipeline_mode<synchronous>, transform_indices = @transform_3, window_bounds = array<i64: 1, 128>}, {pipeline_mode = #tpu.pipeline_mode<synchronous>, transform_indices = @transform_4, window_bounds = array<i64: 1, 128>}, {transform_indices = @transform_5, window_bounds = array<i64: 8, 128>}]} {
    %0 = tpu.iota {dimensions = array<i32: 1>} : vector<1x16xi32>
    %c0 = arith.constant 0 : index
    %c0_0 = arith.constant 0 : index
    %1 = vector.load %arg1[%c0, %c0_0] : memref<8x3xi32, #tpu.memory_space<vmem>>, vector<8x1xi32>
    %c0_i32 = arith.constant 0 : i32
    %2 = vector.broadcast %c0_i32 : i32 to vector<8x1xi32>
    %3 = arith.addi %1, %2 : vector<8x1xi32>
    %4 = vector.broadcast %0 : vector<1x16xi32> to vector<8x16xi32>
    %5 = vector.broadcast %3 : vector<8x1xi32> to vector<8x16xi32>
    %6 = arith.cmpi eq, %4, %5 : vector<8x16xi32>
    %7 = arith.extui %6 : vector<8x16xi1> to vector<8x16xi32>
    %8 = arith.sitofp %7 : vector<8x16xi32> to vector<8x16xf32>
    %c0_1 = arith.constant 0 : index
    %c1 = arith.constant 1 : index
    %9 = vector.load %arg1[%c0_1, %c1] : memref<8x3xi32, #tpu.memory_space<vmem>>, vector<8x1xi32>
    %c4_i32 = arith.constant 4 : i32
    %10 = vector.broadcast %c4_i32 : i32 to vector<8x1xi32>
    %11 = arith.addi %9, %10 : vector<8x1xi32>
    %12 = vector.broadcast %0 : vector<1x16xi32> to vector<8x16xi32>
    %13 = vector.broadcast %11 : vector<8x1xi32> to vector<8x16xi32>
    %14 = arith.cmpi eq, %12, %13 : vector<8x16xi32>
    %15 = arith.extui %14 : vector<8x16xi1> to vector<8x16xi32>
    %16 = arith.sitofp %15 : vector<8x16xi32> to vector<8x16xf32>
    %17 = arith.addf %8, %16 : vector<8x16xf32>
    %c0_2 = arith.constant 0 : index
    %c2 = arith.constant 2 : index
    %18 = vector.load %arg1[%c0_2, %c2] : memref<8x3xi32, #tpu.memory_space<vmem>>, vector<8x1xi32>
    %c9_i32 = arith.constant 9 : i32
    %19 = vector.broadcast %c9_i32 : i32 to vector<8x1xi32>
    %20 = arith.addi %18, %19 : vector<8x1xi32>
    %21 = vector.broadcast %0 : vector<1x16xi32> to vector<8x16xi32>
    %22 = vector.broadcast %20 : vector<8x1xi32> to vector<8x16xi32>
    %23 = arith.cmpi eq, %21, %22 : vector<8x16xi32>
    %24 = arith.extui %23 : vector<8x16xi1> to vector<8x16xi32>
    %25 = arith.sitofp %24 : vector<8x16xi32> to vector<8x16xf32>
    %26 = arith.addf %17, %25 : vector<8x16xf32>
    %c0_3 = arith.constant 0 : index
    %c0_4 = arith.constant 0 : index
    %27 = vector.load %arg2[%c0_3, %c0_4] : memref<16x128xf32, #tpu.memory_space<vmem>>, vector<16x128xf32>
    %cst = arith.constant dense<0.000000e+00> : vector<8x128xf32>
    %28 = tpu.matmul %26, %27, %cst {dimension_numbers = #tpu.dot_dimension_numbers<[1], [0], [0], [1], [0, 0, 1, 1], [], []>} : vector<8x16xf32>, vector<16x128xf32>, vector<8x128xf32> -> vector<8x128xf32>
    %c0_5 = arith.constant 0 : index
    %c0_6 = arith.constant 0 : index
    %29 = vector.load %arg3[%c0_5, %c0_6] : memref<1x128xf32, #tpu.memory_space<vmem>>, vector<1x128xf32>
    %30 = vector.broadcast %29 : vector<1x128xf32> to vector<8x128xf32>
    %31 = arith.addf %28, %30 : vector<8x128xf32>
    %cst_7 = arith.constant dense<0.000000e+00> : vector<8xf32>
    %32 = vector.multi_reduction <add>, %31, %cst_7 [1] : vector<8x128xf32> to vector<8xf32>
    %33 = vector.shape_cast %32 : vector<8xf32> to vector<8x1xf32>
    %cst_8 = arith.constant 1.280000e+02 : f32
    %34 = vector.broadcast %cst_8 : f32 to vector<8x1xf32>
    %35 = arith.divf %33, %34 : vector<8x1xf32>
    %36 = arith.mulf %31, %31 : vector<8x128xf32>
    %cst_9 = arith.constant dense<0.000000e+00> : vector<8xf32>
    %37 = vector.multi_reduction <add>, %36, %cst_9 [1] : vector<8x128xf32> to vector<8xf32>
    %38 = vector.shape_cast %37 : vector<8xf32> to vector<8x1xf32>
    %cst_10 = arith.constant 1.280000e+02 : f32
    %39 = vector.broadcast %cst_10 : f32 to vector<8x1xf32>
    %40 = arith.divf %38, %39 : vector<8x1xf32>
    %41 = arith.mulf %35, %35 : vector<8x1xf32>
    %42 = arith.subf %40, %41 : vector<8x1xf32>
    %cst_11 = arith.constant 0.000000e+00 : f32
    %43 = vector.broadcast %cst_11 : f32 to vector<8x1xf32>
    %44 = arith.maximumf %42, %43 : vector<8x1xf32>
    %45 = vector.broadcast %35 : vector<8x1xf32> to vector<8x128xf32>
    %46 = arith.subf %31, %45 : vector<8x128xf32>
    %cst_12 = arith.constant 9.99999974E-6 : f32
    %47 = vector.broadcast %cst_12 : f32 to vector<8x1xf32>
    %48 = arith.addf %44, %47 : vector<8x1xf32>
    %49 = math.rsqrt %48 : vector<8x1xf32>
    %50 = vector.broadcast %49 : vector<8x1xf32> to vector<8x128xf32>
    %51 = arith.mulf %46, %50 : vector<8x128xf32>
    %c0_13 = arith.constant 0 : index
    %c0_14 = arith.constant 0 : index
    %52 = vector.load %arg4[%c0_13, %c0_14] : memref<1x128xf32, #tpu.memory_space<vmem>>, vector<1x128xf32>
    %53 = vector.broadcast %52 : vector<1x128xf32> to vector<8x128xf32>
    %54 = arith.mulf %51, %53 : vector<8x128xf32>
    %c0_15 = arith.constant 0 : index
    %c0_16 = arith.constant 0 : index
    %55 = vector.load %arg5[%c0_15, %c0_16] : memref<1x128xf32, #tpu.memory_space<vmem>>, vector<1x128xf32>
    %56 = vector.broadcast %55 : vector<1x128xf32> to vector<8x128xf32>
    %57 = arith.addf %54, %56 : vector<8x128xf32>
    %cst_17 = arith.constant 5.000000e-01 : f32
    %58 = vector.broadcast %cst_17 : f32 to vector<8x128xf32>
    %59 = arith.mulf %58, %57 : vector<8x128xf32>
    %cst_18 = arith.constant 0.707106769 : f32
    %60 = vector.broadcast %cst_18 : f32 to vector<8x128xf32>
    %61 = arith.mulf %57, %60 : vector<8x128xf32>
    %cst_19 = arith.constant 0.000000e+00 : f32
    %62 = vector.broadcast %cst_19 : f32 to vector<8x128xf32>
    %63 = arith.cmpf olt, %61, %62 : vector<8x128xf32>
    %cst_20 = arith.constant -1.000000e+00 : f32
    %cst_21 = arith.constant 1.000000e+00 : f32
    %64 = vector.broadcast %cst_20 : f32 to vector<8x128xf32>
    %65 = vector.broadcast %cst_21 : f32 to vector<8x128xf32>
    %66 = arith.select %63, %64, %65 : vector<8x128xi1>, vector<8x128xf32>
    %67 = math.absf %61 : vector<8x128xf32>
    %cst_22 = arith.constant 0.327591091 : f32
    %68 = vector.broadcast %cst_22 : f32 to vector<8x128xf32>
    %69 = arith.mulf %68, %67 : vector<8x128xf32>
    %cst_23 = arith.constant 1.000000e+00 : f32
    %70 = vector.broadcast %cst_23 : f32 to vector<8x128xf32>
    %71 = arith.addf %70, %69 : vector<8x128xf32>
    %cst_24 = arith.constant 1.000000e+00 : f32
    %72 = vector.broadcast %cst_24 : f32 to vector<8x128xf32>
    %73 = arith.divf %72, %71 : vector<8x128xf32>
    %cst_25 = arith.constant 1.06140542 : f32
    %74 = vector.broadcast %cst_25 : f32 to vector<8x128xf32>
    %75 = arith.mulf %74, %73 : vector<8x128xf32>
    %cst_26 = arith.constant -1.45315206 : f32
    %76 = vector.broadcast %cst_26 : f32 to vector<8x128xf32>
    %77 = arith.addf %75, %76 : vector<8x128xf32>
    %78 = arith.mulf %77, %73 : vector<8x128xf32>
    %cst_27 = arith.constant 1.42141378 : f32
    %79 = vector.broadcast %cst_27 : f32 to vector<8x128xf32>
    %80 = arith.addf %78, %79 : vector<8x128xf32>
    %81 = arith.mulf %80, %73 : vector<8x128xf32>
    %cst_28 = arith.constant -0.284496725 : f32
    %82 = vector.broadcast %cst_28 : f32 to vector<8x128xf32>
    %83 = arith.addf %81, %82 : vector<8x128xf32>
    %84 = arith.mulf %83, %73 : vector<8x128xf32>
    %cst_29 = arith.constant 0.254829586 : f32
    %85 = vector.broadcast %cst_29 : f32 to vector<8x128xf32>
    %86 = arith.addf %84, %85 : vector<8x128xf32>
    %87 = arith.mulf %86, %73 : vector<8x128xf32>
    %cst_30 = arith.constant 0.000000e+00 : f32
    %88 = vector.broadcast %cst_30 : f32 to vector<8x128xf32>
    %89 = arith.subf %88, %67 : vector<8x128xf32>
    %90 = arith.mulf %89, %67 : vector<8x128xf32>
    %91 = math.exp %90 : vector<8x128xf32>
    %92 = arith.mulf %87, %91 : vector<8x128xf32>
    %cst_31 = arith.constant 1.000000e+00 : f32
    %93 = vector.broadcast %cst_31 : f32 to vector<8x128xf32>
    %94 = arith.subf %93, %92 : vector<8x128xf32>
    %95 = arith.mulf %66, %94 : vector<8x128xf32>
    %cst_32 = arith.constant 1.000000e+00 : f32
    %96 = vector.broadcast %cst_32 : f32 to vector<8x128xf32>
    %97 = arith.addf %96, %95 : vector<8x128xf32>
    %98 = arith.mulf %59, %97 : vector<8x128xf32>
    %c0_33 = arith.constant 0 : index
    %c0_34 = arith.constant 0 : index
    %99 = vector.load %arg6[%c0_33, %c0_34] : memref<8x128xf32, #tpu.memory_space<vmem>>, vector<8x128xf32>
    tpu.vector_store %arg6[%c0_33, %c0_34], %98 {strides = array<i32>} : memref<8x128xf32, #tpu.memory_space<vmem>>, vector<8x128xf32>,
    return
  }
  func.func @transform_0(%arg0: i32) -> (i32, i32) {
    %c0_i32 = arith.constant 0 : i32
    %c0_i32_0 = arith.constant 0 : i32
    return %arg0, %c0_i32 : i32, i32
  }
  func.func @transform_1(%arg0: i32) -> (i32, i32) {
    %c0_i32 = arith.constant 0 : i32
    %c0_i32_0 = arith.constant 0 : i32
    %c0_i32_1 = arith.constant 0 : i32
    return %c0_i32, %c0_i32_0 : i32, i32
  }
  func.func @transform_2(%arg0: i32) -> (i32, i32) {
    %c0_i32 = arith.constant 0 : i32
    %c0_i32_0 = arith.constant 0 : i32
    %c0_i32_1 = arith.constant 0 : i32
    return %c0_i32, %c0_i32_0 : i32, i32
  }
  func.func @transform_3(%arg0: i32) -> (i32, i32) {
    %c0_i32 = arith.constant 0 : i32
    %c0_i32_0 = arith.constant 0 : i32
    %c0_i32_1 = arith.constant 0 : i32
    return %c0_i32, %c0_i32_0 : i32, i32
  }
  func.func @transform_4(%arg0: i32) -> (i32, i32) {
    %c0_i32 = arith.constant 0 : i32
    %c0_i32_0 = arith.constant 0 : i32
    %c0_i32_1 = arith.constant 0 : i32
    return %c0_i32, %c0_i32_0 : i32, i32
  }
  func.func @transform_5(%arg0: i32) -> (i32, i32) {
    %c0_i32 = arith.constant 0 : i32
    %c0_i32_0 = arith.constant 0 : i32
    return %arg0, %c0_i32 : i32, i32
  }
}

</mosaic_0001>

<llo_original>
// kernel: tpu_custom_call.1
$region0: #{tpu_custom_call.1}
  #allocation0 [shape = 'u32[]', space=smem, size = 0x4, offset = 0x4, fixed_abs, tag = 'smem constant byte address 0x4 - core index']
  #allocation1 [shape = 'u32[144,128]{1,0:T(1,128)}', space=vmem, size = 0x12000, scoped, tag = 'internal scratch']
  %s0 = inlined_call_operand.vmem [shape: s32[16,3], index: 0, kind: input, shape index: {}]
  %s1 = inlined_call_operand.vmem [shape: f32[16,128], index: 1, kind: input, shape index: {}]
  %s2 = inlined_call_operand.vmem [shape: f32[1,128], index: 2, kind: input, shape index: {}]
  %s3 = inlined_call_operand.vmem [shape: f32[1,128], index: 3, kind: input, shape index: {}]
  %s4 = inlined_call_operand.vmem [shape: f32[1,128], index: 4, kind: input, shape index: {}]
  %s5 = inlined_call_operand.hbm [shape: f32[16,128], index: 5, kind: output, shape index: {}]
  %s6 = sld [smem:[#allocation0]]
  $region53: #{tpu_custom_call.1} parent=0
    _
  %s8 = ssub.s32 1, %s6
  %s9 = scalar_select 0, %s8, %s6
  $region1: #{tpu_custom_call.1} parent=0
    #allocation2 [shape = 'u8[8192]{0}', space=vmem, size = 0x2000, scoped, tag = 'output window, operand 0']
    #allocation3 [shape = 's32[2]{0}', space=sflag, size = 0x8, scoped, tag = 'scoped memory for tpu_custom_call.1']
    %10 = vsyncpa [#allocation3], 0
    %s11 = scalar_lea.sflag [#allocation3], 1
    %12 = vsyncpa %s11, 0
    loop: start=0, step=1, limit=4
    $region2: #{tpu_custom_call.1} parent=1 // loop_pre_header
      _
    $region3: #{tpu_custom_call.1} parent=1 // loop_header
      %s14 = sphi 0, %s18
      %p15 = scmp.ge.s32.totalorder %s14, 4
      %s24 = sphi 0, %s26
      %s27 = sphi 0, %s24
      %s28 = sphi 0, %s27
      %s44 = sphi 0, %s28
      %s48 = sphi 0, %s48
      %s50 = sphi 0, %s48
      %s51 = sphi 0, %s50
      %s65 = sphi 0, %s51
      %s69 = sphi 0, %s69
      %s71 = sphi 0, %s69
      %s72 = sphi 0, %s71
      %s86 = sphi 0, %s72
      %s90 = sphi 0, %s90
      %s92 = sphi 0, %s90
      %s93 = sphi 0, %s92
      %s107 = sphi 0, %s93
      %s111 = sphi 0, %s111
      %s113 = sphi 0, %s111
      %s114 = sphi 0, %s113
      %s128 = sphi 0, %s114
      %s134 = sphi 0, %s136
      %s137 = sphi 0, %s134
      %s138 = sphi 0, %s137
      %s154 = sphi 0, %s138
    $region4: #{tpu_custom_call.1} parent=1 // loop_header_branch
      %17 = sbr.rel (%p15) target = $region8
    $region5: #{tpu_custom_call.1} parent=1 // loop_body
      %s19 = ssub.s32 %s14, 1
      %s20 = ssub.s32 %s14, 2
      %s21 = sadd.s32 %s14, 1
      %s22 = ssub.s32 %s14, %s21
      %p23 = scmp.eq.s32.totalorder %s22, 0
      %s25 = sadd.s32 %s24, 1
      %s26 = scalar_select %p23, %s24, %s25
      %p29 = pneg %p23
      %p30 = scmp.eq.s32.totalorder %s14, 1
      %p31 = por %p29, %p30
      %p32 = scmp.ne.s32.totalorder %s24, %s27
      %p33 = scmp.eq.s32.totalorder %s14, 0
      %p34 = por %p32, %p33
      %p35 = scmp.ne.s32.totalorder %s24, %s27
      %p36 = scmp.eq.s32.totalorder %s19, 1
      %p37 = por %p35, %p36
      %p38 = scmp.ne.s32.totalorder %s27, %s28
      %p39 = scmp.eq.s32.totalorder %s19, 0
      %p40 = por %p38, %p39
      %p41 = scmp.ne.s32.totalorder %s27, %s28
      %p42 = scmp.eq.s32.totalorder %s20, 1
      %p43 = por %p41, %p42
      %p45 = scmp.ne.s32.totalorder %s28, %s44
      %p46 = scmp.eq.s32.totalorder %s20, 0
      %p47 = por %p45, %p46
      %s49 = sadd.s32 %s48, 1
      %p52 = scmp.eq.s32.totalorder %s14, 1
      %p53 = scmp.ne.s32.totalorder %s48, %s50
      %p54 = scmp.eq.s32.totalorder %s14, 0
      %p55 = por %p53, %p54
      %p56 = scmp.ne.s32.totalorder %s48, %s50
      %p57 = scmp.eq.s32.totalorder %s19, 1
      %p58 = por %p56, %p57
      %p59 = scmp.ne.s32.totalorder %s50, %s51
      %p60 = scmp.eq.s32.totalorder %s19, 0
      %p61 = por %p59, %p60
      %p62 = scmp.ne.s32.totalorder %s50, %s51
      %p63 = scmp.eq.s32.totalorder %s20, 1
      %p64 = por %p62, %p63
      %p66 = scmp.ne.s32.totalorder %s51, %s65
      %p67 = scmp.eq.s32.totalorder %s20, 0
      %p68 = por %p66, %p67
      %s70 = sadd.s32 %s69, 1
      %p73 = scmp.eq.s32.totalorder %s14, 1
      %p74 = scmp.ne.s32.totalorder %s69, %s71
      %p75 = scmp.eq.s32.totalorder %s14, 0
      %p76 = por %p74, %p75
      %p77 = scmp.ne.s32.totalorder %s69, %s71
      %p78 = scmp.eq.s32.totalorder %s19, 1
      %p79 = por %p77, %p78
      %p80 = scmp.ne.s32.totalorder %s71, %s72
      %p81 = scmp.eq.s32.totalorder %s19, 0
      %p82 = por %p80, %p81
      %p83 = scmp.ne.s32.totalorder %s71, %s72
      %p84 = scmp.eq.s32.totalorder %s20, 1
      %p85 = por %p83, %p84
      %p87 = scmp.ne.s32.totalorder %s72, %s86
      %p88 = scmp.eq.s32.totalorder %s20, 0
      %p89 = por %p87, %p88
      %s91 = sadd.s32 %s90, 1
      %p94 = scmp.eq.s32.totalorder %s14, 1
      %p95 = scmp.ne.s32.totalorder %s90, %s92
      %p96 = scmp.eq.s32.totalorder %s14, 0
      %p97 = por %p95, %p96
      %p98 = scmp.ne.s32.totalorder %s90, %s92
      %p99 = scmp.eq.s32.totalorder %s19, 1
      %p100 = por %p98, %p99
      %p101 = scmp.ne.s32.totalorder %s92, %s93
      %p102 = scmp.eq.s32.totalorder %s19, 0
      %p103 = por %p101, %p102
      %p104 = scmp.ne.s32.totalorder %s92, %s93
      %p105 = scmp.eq.s32.totalorder %s20, 1
      %p106 = por %p104, %p105
      %p108 = scmp.ne.s32.totalorder %s93, %s107
      %p109 = scmp.eq.s32.totalorder %s20, 0
      %p110 = por %p108, %p109
      %s112 = sadd.s32 %s111, 1
      %p115 = scmp.eq.s32.totalorder %s14, 1
      %p116 = scmp.ne.s32.totalorder %s111, %s113
      %p117 = scmp.eq.s32.totalorder %s14, 0
      %p118 = por %p116, %p117
      %p119 = scmp.ne.s32.totalorder %s111, %s113
      %p120 = scmp.eq.s32.totalorder %s19, 1
      %p121 = por %p119, %p120
      %p122 = scmp.ne.s32.totalorder %s113, %s114
      %p123 = scmp.eq.s32.totalorder %s19, 0
      %p124 = por %p122, %p123
      %p125 = scmp.ne.s32.totalorder %s113, %s114
      %p126 = scmp.eq.s32.totalorder %s20, 1
      %p127 = por %p125, %p126
      %p129 = scmp.ne.s32.totalorder %s114, %s128
      %p130 = scmp.eq.s32.totalorder %s20, 0
      %p131 = por %p129, %p130
      %s132 = ssub.s32 %s14, %s21
      %p133 = scmp.eq.s32.totalorder %s132, 0
      %s135 = sadd.s32 %s134, 1
      %s136 = scalar_select %p133, %s134, %s135
      %p139 = pneg %p133
      %p140 = scmp.eq.s32.totalorder %s14, 1
      %p141 = por %p139, %p140
      %p142 = scmp.ne.s32.totalorder %s134, %s137
      %p143 = scmp.eq.s32.totalorder %s14, 0
      %p144 = por %p142, %p143
      %p145 = scmp.ne.s32.totalorder %s134, %s137
      %p146 = scmp.eq.s32.totalorder %s19, 1
      %p147 = por %p145, %p146
      %p148 = scmp.ne.s32.totalorder %s137, %s138
      %p149 = scmp.eq.s32.totalorder %s19, 0
      %p150 = por %p148, %p149
      %p151 = scmp.ne.s32.totalorder %s137, %s138
      %p152 = scmp.eq.s32.totalorder %s20, 1
      %p153 = por %p151, %p152
      %p155 = scmp.ne.s32.totalorder %s138, %s154
      %p156 = scmp.eq.s32.totalorder %s20, 0
      %p157 = por %p155, %p156
      %p158 = scmp.le.s32.totalorder 1, %s14
      %p159 = scmp.lt.s32.totalorder %s14, 3
      %p160 = pnand %p158, %p159
      %p161 = pneg %p160
      // Predicated region
      $region9: #{tpu_custom_call.1} parent=5 // pred_check
        _
      $region10: #{tpu_custom_call.1} parent=5 // pred_check_branch
        %163 = sbr.rel (%p160) target = $region12
      $region11: #{tpu_custom_call.1} parent=5 // pred_region
        %s164 = ssub.s32 %s14, 1
        // Predicated region
        $region13: #{tpu_custom_call.1} parent=11 // pred_check
          %p165 = pneg %p61
        $region14: #{tpu_custom_call.1} parent=11 // pred_check_branch
          %167 = sbr.rel (%p165) target = $region16
        $region15: #{tpu_custom_call.1} parent=11 // pred_region
          _
        $region16: #{tpu_custom_call.1} parent=11 // pred_fallthru
          _
        // Predicated region
        $region17: #{tpu_custom_call.1} parent=11 // pred_check
          %p168 = pneg %p82
        $region18: #{tpu_custom_call.1} parent=11 // pred_check_branch
          %170 = sbr.rel (%p168) target = $region20
        $region19: #{tpu_custom_call.1} parent=11 // pred_region
          _
        $region20: #{tpu_custom_call.1} parent=11 // pred_fallthru
          _
        // Predicated region
        $region21: #{tpu_custom_call.1} parent=11 // pred_check
          %p171 = pneg %p103
        $region22: #{tpu_custom_call.1} parent=11 // pred_check_branch
          %173 = sbr.rel (%p171) target = $region24
        $region23: #{tpu_custom_call.1} parent=11 // pred_region
          _
        $region24: #{tpu_custom_call.1} parent=11 // pred_fallthru
          _
        // Predicated region
        $region25: #{tpu_custom_call.1} parent=11 // pred_check
          %p174 = pneg %p124
        $region26: #{tpu_custom_call.1} parent=11 // pred_check_branch
          %176 = sbr.rel (%p174) target = $region28
        $region27: #{tpu_custom_call.1} parent=11 // pred_region
          _
        $region28: #{tpu_custom_call.1} parent=11 // pred_fallthru
          _
      $region12: #{tpu_custom_call.1} parent=5 // pred_fallthru
        _
      %p177 = scmp.lt.s32.totalorder %s14, 2
      // Predicated region
      $region29: #{tpu_custom_call.1} parent=5 // pred_check
        %p178 = pneg %p177
      $region30: #{tpu_custom_call.1} parent=5 // pred_check_branch
        %180 = sbr.rel (%p178) target = $region32
      $region31: #{tpu_custom_call.1} parent=5 // pred_region
        // Predicated region
        $region33: #{tpu_custom_call.1} parent=31 // pred_check
          %p181 = pneg %p34
        $region34: #{tpu_custom_call.1} parent=31 // pred_check_branch
          %183 = sbr.rel (%p181) target = $region36
        $region35: #{tpu_custom_call.1} parent=31 // pred_region
          %p184 = scmp.lt.s32.totalorder %s14, 1
          %s185 = scalar_select %p184, %s14, 1
          %s186 = smul.addr %s185, 8
          %s187 = scalar_lea.vmem %s0, %s186
        $region36: #{tpu_custom_call.1} parent=31 // pred_fallthru
          _
      $region32: #{tpu_custom_call.1} parent=5 // pred_fallthru
        _
      %p188 = scmp.le.s32.totalorder 1, %s14
      %p189 = scmp.lt.s32.totalorder %s14, 3
      %p190 = pnand %p188, %p189
      %p191 = pneg %p190
      // Predicated region
      $region37: #{tpu_custom_call.1} parent=5 // pred_check
        _
      $region38: #{tpu_custom_call.1} parent=5 // pred_check_branch
        %193 = sbr.rel (%p190) target = $region40
      $region39: #{tpu_custom_call.1} parent=5 // pred_region
        %s194 = ssub.s32 %s14, 1
        %p195 = scmp.lt.s32.totalorder %s19, 1
        %s196 = scalar_select %p195, %s19, 1
        %s197 = smul.addr %s196, 8
        %s198 = scalar_lea.vmem %s0, %s197
        %p199 = pneg %p40
        %p200 = pneg %p37
        %p201 = pneg %p61
        %p202 = pneg %p58
        %p203 = pneg %p82
        %p204 = pneg %p79
        %p205 = pneg %p103
        %p206 = pneg %p100
        %p207 = pneg %p124
        %p208 = pneg %p121
        %p209 = pneg %p150
        %p210 = pneg %p147
        %s211 = sand.u32 %s137, 1
        %s212 = scalar_lea.sflag [#allocation3], %s211
        %s213 = sand.u32 %s137, 1
        %s214 = smul.addr %s213, 8
        %s215 = scalar_lea.vmem [#allocation2], %s214
        %p216 = scmp.lt.s32.totalorder %s19, 1
        %s217 = scalar_select %p216, %s19, 1
        %s218 = smul.addr %s217, 8
        %s219 = scalar_lea.vmem %s0, %s218
        %v220 = vlaneseq
        %v221 = vand.u32 %v220, 127
        %v222 = vld [vmem:[%s219] sm:$0xff]
        %223 = vset.pattern.permute.xlu0 0
        %224 = vperm.xlu0 %223, %v222
        %v225 = vpop.permute.xlu0 %224
        %vm226 = vcmp.eq.s32.totalorder %v221, %v225
        %v227 = vsel %vm226, 1, 0
        %v228 = vcvt.s32.f32 %v227
        %v229 = vadd.s32 %v222, 4
        %230 = vset.pattern.permute.xlu0 1
        %231 = vperm.xlu0 %230, %v229
        %v232 = vpop.permute.xlu0 %231
        %vm233 = vcmp.eq.s32.totalorder %v221, %v232
        %v234 = vsel %vm233, 1, 0
        %v235 = vcvt.s32.f32 %v234
        %v236 = vadd.f32 %v228, %v235
        %v237 = vadd.s32 %v222, 9
        %238 = vset.pattern.permute.xlu0 2
        %239 = vperm.xlu0 %238, %v237
        %v240 = vpop.permute.xlu0 %239
        %vm241 = vcmp.eq.s32.totalorder %v221, %v240
        %v242 = vsel %vm241, 1, 0
        %v243 = vcvt.s32.f32 %v242
        %v244 = vadd.f32 %v236, %v243
        %v245 = vld [vmem:[%s1] sm:$0xff]
        %v246 = vld [vmem:[%s1 + $0x8] sm:$0xff]
        %v247 = vld [vmem:[%s2] sm:$0x1]
        %v249 = vlaneseq
        %v250 = vshrl.u32 %v249, 7
        %v251 = vsub.s32 0, %v250
        %v252 = vrot.slane %v247, %v251
        %vm254 = vcmask 130048
        %v256 = vsel %vm254, %v244, 0
        %258 = vmatprep.subr.mxu0 0.0
        %259 = vmatpush1.msra.mxu0 %v245
        %260 = vmatprep.subr.mxu0 0.0
        %261 = vmatpush1.msra.mxu0 %v246
        %262 = vmatprep.subr.mxu0 0.0
        %263 = vmatpush1.msra.mxu0 0.0
        %264 = vmatprep.subr.mxu0 0.0
        %265 = vmatpush1.msra.mxu0 0.0
        %266 = vmatprep.subr.mxu0 0.0
        %267 = vmatpush1.msra.mxu0 0.0
        %268 = vmatprep.subr.mxu0 0.0
        %269 = vmatpush1.msra.mxu0 0.0
        %270 = vmatprep.subr.mxu0 0.0
        %271 = vmatpush1.msra.mxu0 0.0
        %272 = vmatprep.subr.mxu0 0.0
        %273 = vmatpush1.msra.mxu0 0.0
        %274 = vmatprep.subr.mxu0 0.0
        %275 = vmatpush1.msra.mxu0 0.0
        %276 = vmatprep.subr.mxu0 0.0
        %277 = vmatpush1.msra.mxu0 0.0
        %278 = vmatprep.subr.mxu0 0.0
        %279 = vmatpush1.msra.mxu0 0.0
        %280 = vmatprep.subr.mxu0 0.0
        %281 = vmatpush1.msra.mxu0 0.0
        %282 = vmatprep.subr.mxu0 0.0
        %283 = vmatpush1.msra.mxu0 0.0
        %284 = vmatprep.subr.mxu0 0.0
        %285 = vmatpush1.msra.mxu0 0.0
        %286 = vmatprep.subr.mxu0 0.0
        %287 = vmatpush1.msra.mxu0 0.0
        %288 = vmatprep.subr.mxu0 0.0
        %289 = vmatpush1.msra.mxu0 0.0
        %290 = vmatprep.subr.mxu0 0.0
        %291 = vmatpush1.msra.mxu0 0.0
        %292 = vmatprep.subr.mxu0 0.0
        %293 = vmatpush1.msra.mxu0 0.0
        %294 = vmatprep.subr.mxu0 0.0
        %295 = vmatpush1.msra.mxu0 0.0
        %296 = vmatprep.subr.mxu0 0.0
        %297 = vmatpush1.msra.mxu0 0.0
        %298 = vmatprep.subr.mxu0 0.0
        %299 = vmatpush1.msra.mxu0 0.0
        %300 = vmatprep.subr.mxu0 0.0
        %301 = vmatpush1.msra.mxu0 0.0
        %302 = vmatprep.subr.mxu0 0.0
        %303 = vmatpush1.msra.mxu0 0.0
        %304 = vmatprep.subr.mxu0 0.0
        %305 = vmatpush1.msra.mxu0 0.0
        %306 = vmatprep.subr.mxu0 0.0
        %307 = vmatpush1.msra.mxu0 0.0
        %308 = vmatprep.subr.mxu0 0.0
        %309 = vmatpush1.msra.mxu0 0.0
        %310 = vmatprep.subr.mxu0 0.0
        %311 = vmatpush1.msra.mxu0 0.0
        %312 = vmatprep.subr.mxu0 0.0
        %313 = vmatpush1.msra.mxu0 0.0
        %314 = vmatprep.subr.mxu0 0.0
        %315 = vmatpush1.msra.mxu0 0.0
        %316 = vmatprep.subr.mxu0 0.0
        %317 = vmatpush1.msra.mxu0 0.0
        %318 = vmatprep.subr.mxu0 0.0
        %319 = vmatpush1.msra.mxu0 0.0
        %320 = vmatprep.subr.mxu0 0.0
        %321 = vmatpush1.msra.mxu0 0.0
        %322 = vmatprep.mubr.f32.mxu0 0.0
        %323 = vmatmul.mubr.f32.gmra.mrb[0].mxu0 %v256
        %v324 = vpop.f32.mrb[0].mxu0
        %v325 = vadd.f32 %v252, %v324
        %v326 = vpop.f32.mrb[0].mxu0
        %327 = vdwg.mxu0
        %328 = vadd.xlane.f32.xlu0 %v325
        %v329 = vpop.xlane.xlu0 %328
        %v330 = vrcp.pop 128.0
        %v331 = vmul.f32 %v329, %v330
        %v332 = vmul.f32 %v325, %v325
        %333 = vadd.xlane.f32.xlu0 %v332
        %v334 = vpop.xlane.xlu0 %333
        %v335 = vmul.f32 %v334, %v330
        %v336 = vmul.f32 %v331, %v331
        %v337 = vsub.f32 %v335, %v336
        %v338 = vmax.f32 %v337, 0.0
        %v339 = vsub.f32 %v325, %v331
        %v340 = vadd.f32 %v338, 1e-05
        %v341 = vrsqrt.pop %v340
        %v342 = vmul.f32 %v339, %v341
        %v343 = vld [vmem:[%s3] sm:$0x1]
        %v345 = vlaneseq
        %v346 = vshrl.u32 %v345, 7
        %v347 = vsub.s32 0, %v346
        %v348 = vrot.slane %v343, %v347
        %v350 = vmul.f32 %v342, %v348
        %v351 = vld [vmem:[%s4] sm:$0x1]
        %v353 = vlaneseq
        %v354 = vshrl.u32 %v353, 7
        %v355 = vsub.s32 0, %v354
        %v356 = vrot.slane %v351, %v355
        %v358 = vadd.f32 %v350, %v356
        %v359 = vmul.f32 %v358, 0.5
        %v360 = vmul.f32 %v358, 0.70710677
        %vm361 = vcmp.lt.f32.partialorder %v360, 0.0
        %v362 = vsel %vm361, -1.0, 1.0
        %v363 = vand.u32 2147483647, %v360
        %v364 = vmul.f32 %v363, 0.3275911
        %v365 = vadd.f32 %v364, 1.0
        %v366 = vrcp.pop %v365
        %v367 = vmul.f32 1.0, %v366
        %v368 = vmul.f32 %v367, 1.0614054
        %v369 = vadd.f32 %v368, -1.4531521
        %v370 = vmul.f32 %v369, %v367
        %v371 = vadd.f32 %v370, 1.4214138
        %v372 = vmul.f32 %v371, %v367
        %v373 = vadd.f32 %v372, -0.28449672
        %v374 = vmul.f32 %v373, %v367
        %v375 = vadd.f32 %v374, 0.2548296
        %v376 = vmul.f32 %v375, %v367
        %v377 = vsub.f32 0.0, %v363
        %v378 = vmul.f32 %v377, %v363
        %v379 = vmul.f32 %v378, 1.442695
        %v380 = vpow.pop %v379
        %v381 = vmul.f32 %v376, %v380
        %v382 = vsub.f32 1.0, %v381
        %v383 = vmul.f32 %v362, %v382
        %v384 = vadd.f32 %v383, 1.0
        %v385 = vmul.f32 %v359, %v384
        %386 = vst [vmem:[%s215] sm:$0xff] %v385
        %s387 = sand.u32 %s137, 1
        %s388 = scalar_lea.sflag [#allocation3], %s387
        %s389 = sand.u32 %s137, 1
        %s390 = smul.addr %s389, 8
        %s391 = scalar_lea.vmem [#allocation2], %s390
        // Predicated region
        $region41: #{tpu_custom_call.1} parent=39 // pred_check
          %p392 = pneg %p147
        $region42: #{tpu_custom_call.1} parent=39 // pred_check_branch
          %394 = sbr.rel (%p392) target = $region44
        $region43: #{tpu_custom_call.1} parent=39 // pred_region
          %s396 = ssub.s32 128, 128
          %397 = vsyncadd %s388, %s396
          %s398 = smul.addr %s19, 128
          %s399 = scalar_lea.hbm %s5, %s398
          %s401 = sshll.u32 %s391, 4
          %s402 = int_to_ptr.vmem [resolvable:$true] %s401
          %404 = dma.vmem_to_hbm [thread:$0]  %s402, 128, %s399, %s388
        $region44: #{tpu_custom_call.1} parent=39 // pred_fallthru
          _
      $region40: #{tpu_custom_call.1} parent=5 // pred_fallthru
        _
      %p405 = scmp.le.s32.totalorder 2, %s14
      // Predicated region
      $region45: #{tpu_custom_call.1} parent=5 // pred_check
        %p406 = pneg %p405
      $region46: #{tpu_custom_call.1} parent=5 // pred_check_branch
        %408 = sbr.rel (%p406) target = $region48
      $region47: #{tpu_custom_call.1} parent=5 // pred_region
        %s409 = ssub.s32 %s14, 2
        // Predicated region
        $region49: #{tpu_custom_call.1} parent=47 // pred_check
          %p410 = pneg %p153
        $region50: #{tpu_custom_call.1} parent=47 // pred_check_branch
          %412 = sbr.rel (%p410) target = $region52
        $region51: #{tpu_custom_call.1} parent=47 // pred_region
          %s413 = sand.u32 %s138, 1
          %s414 = scalar_lea.sflag [#allocation3], %s413
          %s415 = sand.u32 %s138, 1
          %s416 = smul.addr %s415, 8
          %s417 = scalar_lea.vmem [#allocation2], %s416
          %418 = dma.done %s414, 128
        $region52: #{tpu_custom_call.1} parent=47 // pred_fallthru
          _
      $region48: #{tpu_custom_call.1} parent=5 // pred_fallthru
        _
    $region6: #{tpu_custom_call.1} parent=1 // loop_footer
      %s18 = sadd.s32 1, %s14
    $region7: #{tpu_custom_call.1} parent=1 // loop_footer_branch
      %13 = sbr.rel target = $region3
    $region8: #{tpu_custom_call.1} parent=1 // loop_exit
      _
    %419 = vsyncpa [#allocation3], 1
    %s420 = scalar_lea.sflag [#allocation3], 1
    %421 = vsyncpa %s420, 1

</llo_original>
